<compile_context>
chip_gen: v6e
topology: v6e:2x2x1
jax: 0.10.0
libtpu: 0.0.40
codegen_flags: <defaults>
</compile_context>

<pallas_src>
import functools

import jax
import jax.numpy as jnp
from jax.experimental import pallas as pl
from jax.experimental.pallas import tpu as pltpu


# ---------------------------------------------------------------------------
# Kernels (transposed layout: P / H on sublanes, batch*frame on lanes)
# ---------------------------------------------------------------------------
def _logits_t(x_ref, wc_ref, bc_ref, wl_ref, bl_ref):
    """Conv(kernel==stride)-as-matmul + bias + ReLU + linear classifier.

    x_ref  : (CK, TN)  im2col'd windows, frame axis on lanes
    wc_ref : (H, CK)   conv weight, transposed & (c,k)-flattened
    bc_ref : (H, 1)
    wl_ref : (P, H)
    bl_ref : (P, 1)
    Returns logits of shape (P, TN) in float32.
    """
    h = jnp.dot(wc_ref[...], x_ref[...], preferred_element_type=jnp.float32)
    h = jnp.maximum(h + bc_ref[...], 0.0)                 # (H, TN), lane-dense
    return jnp.dot(wl_ref[...], h, preferred_element_type=jnp.float32) + bl_ref[...]


def _softmax_kernel(x_ref, wc_ref, bc_ref, wl_ref, bl_ref, out_ref):
    logits = _logits_t(x_ref, wc_ref, bc_ref, wl_ref, bl_ref)   # (P, TN)
    m = jnp.max(logits, axis=0, keepdims=True)                  # sublane reduce (XLU)
    e = jnp.exp(logits - m)                                     # lane-dense EUP exp
    denom = jnp.sum(e, axis=0, keepdims=True)
    # Exact divide (not pl.reciprocal(approx=True)) so each row sums to 1.
    out_ref[...] = e / denom


def _onehot_kernel(x_ref, wc_ref, bc_ref, wl_ref, bl_ref, out_ref):
    logits = _logits_t(x_ref, wc_ref, bc_ref, wl_ref, bl_ref)   # (P, TN)
    num_p = logits.shape[0]
    m = jnp.max(logits, axis=0, keepdims=True)
    iota = jax.lax.broadcasted_iota(jnp.int32, logits.shape, 0)
    # argmax with lowest-index tie-break (matches torch/jnp) via masked min.
    idx = jnp.min(jnp.where(logits == m, iota, num_p), axis=0, keepdims=True)
    # TODO(synk): torch uses int64 (torch.long) for the one-hot output; int32 here
    # (int8 would further cut output HBM traffic if the consumer allows it).
    out_ref[...] = (iota == idx).astype(jnp.int32)


# ---------------------------------------------------------------------------
# Tiling heuristic
# ---------------------------------------------------------------------------
def _choose_tn(N, ck, h, p, vmem_budget_bytes=20 * 1024 * 1024):
    """Lane-tile width along the flattened (batch*frame) axis.

    Multiple of 128 (or the full N for tiny problems), budgeted against the
    PADDED VMEM footprint (double-buffered data & output blocks + live
    intermediates), capped so at least two grid blocks exist when N >= 256.
    """
    def rup(x, m):
        return (x + m - 1) // m * m

    if N < 256:
        return N                      # single full-width block (full-dim rule)

    # Rough padded f32 bytes per output column.
    per_col = 4 * (2 * rup(ck, 8) + 2 * rup(p, 8) + rup(h, 8) + 2 * rup(p, 8))
    tn = (vmem_budget_bytes // per_col) // 128 * 128
    tn = max(128, min(tn, 2048))
    # Keep at least 2 grid blocks so both v7x TensorCores get work.
    tn = min(tn, rup(pl.cdiv(N, 2), 128))
    return tn


# ---------------------------------------------------------------------------
# Parameters / wrapper
# ---------------------------------------------------------------------------
def init_params(key, c_in, kernel, hidden, n_phones):
    k1, k2, k3, k4 = jax.random.split(key, 4)
    # PyTorch Conv1d weight (H, C_in, K) -> kernel layout (C, K, H)
    wc_torch = 0.1 * jax.random.normal(k1, (hidden, c_in, kernel), jnp.float32)
    wc = jnp.transpose(wc_torch, (1, 2, 0))           # (C, K, H)
    bc = 0.1 * jax.random.normal(k2, (hidden,), jnp.float32)
    wl = 0.1 * jax.random.normal(k3, (hidden, n_phones), jnp.float32)
    bl = 0.1 * jax.random.normal(k4, (n_phones,), jnp.float32)
    return {"wc": wc, "bc": bc, "wl": wl, "bl": bl}


@functools.partial(jax.jit, static_argnames=("one_hot",))
def model_phone_combined(data, params, *, one_hot=False):
    """data: (B, C_in, T) float32 (NCW, PyTorch Conv1d convention). Returns (B, S, P)."""
    wc, bc, wl, bl = params["wc"], params["bc"], params["wl"], params["bl"]
    B, C, T = data.shape
    Cw, K, H = wc.shape
    assert Cw == C
    S = T // K                    # downsampling factor = K (stride == kernel)
    P = wl.shape[1]
    N = B * S
    CK = C * K

    # One input-sized transpose pass: non-overlapping conv windows with the
    # flattened (batch*frame) axis on lanes and the small (C*K) contraction on
    # sublanes. Column n = b*S + s holds window (b, s) in (c, k)-major order.
    data_t = (data[:, :, : S * K].reshape(B, C, S, K)
              .transpose(1, 3, 0, 2).reshape(CK, N))
    wc_t = wc.reshape(CK, H).T          # (H, CK)
    wl_t = wl.T                         # (P, H)
    bc_c = bc.reshape(H, 1)
    bl_c = bl.reshape(P, 1)

    TN = _choose_tn(N, CK, H, P)
    grid = (pl.cdiv(N, TN),)

    kernel_fn = _onehot_kernel if one_hot else _softmax_kernel
    out_dtype = jnp.int32 if one_hot else jnp.float32

    cost = pl.CostEstimate(
        flops=2 * N * (CK * H + H * P),
        transcendentals=0 if one_hot else N * P,
        bytes_accessed=4 * (CK * N + H * CK + H + P * H + P + P * N),
    )

    out_t = pl.pallas_call(
        kernel_fn,
        out_shape=jax.ShapeDtypeStruct((P, N), out_dtype),
        grid=grid,
        in_specs=[
            # data windows: tiled along the lane (batch*frame) axis
            pl.BlockSpec((CK, TN), lambda i: (0, i)),
            # weights / biases: full blocks, constant index_map -> resident
            pl.BlockSpec((H, CK), lambda i: (0, 0)),
            pl.BlockSpec((H, 1), lambda i: (0, 0)),
            pl.BlockSpec((P, H), lambda i: (0, 0)),
            pl.BlockSpec((P, 1), lambda i: (0, 0)),
        ],
        out_specs=pl.BlockSpec((P, TN), lambda i: (0, i)),
        compiler_params=pltpu.CompilerParams(
            dimension_semantics=("parallel",),
            vmem_limit_bytes=32 * 1024 * 1024,
        ),
        cost_estimate=cost,
    )(data_t, wc_t, bc_c, wl_t, bl_c)

    # (P, B*S) -> (B, S, P): one output-sized transpose in XLA; the kernel-side
    # layout stays lane-dense (full-width stores + efficient output DMA).
    return out_t.reshape(P, B, S).transpose(1, 2, 0)


# ---------------------------------------------------------------------------
# Pure-JAX reference
# ---------------------------------------------------------------------------
def _reference(data, params, *, one_hot=False):
    wc, bc, wl, bl = params["wc"], params["bc"], params["wl"], params["bl"]
    B, C, T = data.shape
    _, K, H = wc.shape
    S = T // K
    P = wl.shape[1]
    patches = (data[:, :, : S * K].reshape(B, C, S, K)
               .transpose(0, 2, 1, 3).reshape(B * S, C * K))
    h = jnp.maximum(patches @ wc.reshape(C * K, H) + bc, 0.0)
    logits = h @ wl + bl
    if one_hot:
        out = jax.nn.one_hot(jnp.argmax(logits, axis=-1), P, dtype=jnp.int32)
    else:
        out = jax.nn.softmax(logits, axis=-1)
    return out.reshape(B, S, P)


if __name__ == "__main__":
    B, C_IN, T = 2, 4, 32          # input (B, C_in, T), NCW like PyTorch Conv1d
    K, HIDDEN, N_PHONES = 4, 32, 16

    key = jax.random.PRNGKey(0)
    kd, kp = jax.random.split(key)
    data = jax.random.normal(kd, (B, C_IN, T), jnp.float32)
    params = init_params(kp, C_IN, K, HIDDEN, N_PHONES)

    # oneHot = False path (softmax over phone dim)
    probs = jax.block_until_ready(model_phone_combined(data, params, one_hot=False))
    ref_probs = _reference(data, params, one_hot=False)
    assert probs.shape == (B, T // K, N_PHONES)
    assert jnp.allclose(probs, ref_probs, atol=2e-3, rtol=2e-3)
    # rows must sum to 1 (exact divide in the kernel, no approx reciprocal)
    assert jnp.allclose(jnp.sum(probs, axis=-1), 1.0, atol=1e-5)

    # oneHot = True path (argmax + one-hot)
    oh = jax.block_until_ready(model_phone_combined(data, params, one_hot=True))
    ref_oh = _reference(data, params, one_hot=True)
    assert oh.shape == (B, T // K, N_PHONES)
    assert jnp.array_equal(oh, ref_oh)

    print("KERNEL_OK")
</pallas_src>

<mosaic_0001>
module attributes {stable_mosaic.version = 11 : i64} {
  func.func @_softmax_kernel(%arg0: i32, %arg1: memref<16x16xf32, #tpu.memory_space<vmem>>, %arg2: memref<32x16xf32, #tpu.memory_space<vmem>>, %arg3: memref<32x1xf32, #tpu.memory_space<vmem>>, %arg4: memref<16x32xf32, #tpu.memory_space<vmem>>, %arg5: memref<16x1xf32, #tpu.memory_space<vmem>>, %arg6: memref<16x16xf32, #tpu.memory_space<vmem>>) attributes {dimension_semantics = [#tpu.dimension_semantics<parallel>], iteration_bounds = array<i64: 1>, scalar_prefetch = 0 : i64, scratch_operands = 0 : i64, tpu.core_type = #tpu.core_type<tc>, window_params = [{transform_indices = @transform_0, window_bounds = array<i64: 16, 16>}, {pipeline_mode = #tpu.pipeline_mode<synchronous>, transform_indices = @transform_1, window_bounds = array<i64: 32, 16>}, {pipeline_mode = #tpu.pipeline_mode<synchronous>, transform_indices = @transform_2, window_bounds = array<i64: 32, 1>}, {pipeline_mode = #tpu.pipeline_mode<synchronous>, transform_indices = @transform_3, window_bounds = array<i64: 16, 32>}, {pipeline_mode = #tpu.pipeline_mode<synchronous>, transform_indices = @transform_4, window_bounds = array<i64: 16, 1>}, {transform_indices = @transform_5, window_bounds = array<i64: 16, 16>}]} {
    %c0 = arith.constant 0 : index
    %c0_0 = arith.constant 0 : index
    %0 = vector.load %arg2[%c0, %c0_0] : memref<32x16xf32, #tpu.memory_space<vmem>>, vector<32x16xf32>
    %c0_1 = arith.constant 0 : index
    %c0_2 = arith.constant 0 : index
    %1 = vector.load %arg1[%c0_1, %c0_2] : memref<16x16xf32, #tpu.memory_space<vmem>>, vector<16x16xf32>
    %cst = arith.constant dense<0.000000e+00> : vector<32x16xf32>
    %2 = tpu.matmul %0, %1, %cst {dimension_numbers = #tpu.dot_dimension_numbers<[1], [0], [0], [1], [0, 0, 1, 1], [], []>} : vector<32x16xf32>, vector<16x16xf32>, vector<32x16xf32> -> vector<32x16xf32>
    %c0_3 = arith.constant 0 : index
    %c0_4 = arith.constant 0 : index
    %3 = vector.load %arg3[%c0_3, %c0_4] : memref<32x1xf32, #tpu.memory_space<vmem>>, vector<32x1xf32>
    %4 = vector.broadcast %3 : vector<32x1xf32> to vector<32x16xf32>
    %5 = arith.addf %2, %4 : vector<32x16xf32>
    %cst_5 = arith.constant 0.000000e+00 : f32
    %6 = vector.broadcast %cst_5 : f32 to vector<32x16xf32>
    %7 = arith.maximumf %5, %6 : vector<32x16xf32>
    %c0_6 = arith.constant 0 : index
    %c0_7 = arith.constant 0 : index
    %8 = vector.load %arg4[%c0_6, %c0_7] : memref<16x32xf32, #tpu.memory_space<vmem>>, vector<16x32xf32>
    %cst_8 = arith.constant dense<0.000000e+00> : vector<16x16xf32>
    %9 = tpu.matmul %8, %7, %cst_8 {dimension_numbers = #tpu.dot_dimension_numbers<[1], [0], [0], [1], [0, 0, 1, 1], [], []>} : vector<16x32xf32>, vector<32x16xf32>, vector<16x16xf32> -> vector<16x16xf32>
    %c0_9 = arith.constant 0 : index
    %c0_10 = arith.constant 0 : index
    %10 = vector.load %arg5[%c0_9, %c0_10] : memref<16x1xf32, #tpu.memory_space<vmem>>, vector<16x1xf32>
    %11 = vector.broadcast %10 : vector<16x1xf32> to vector<16x16xf32>
    %12 = arith.addf %9, %11 : vector<16x16xf32>
    %cst_11 = arith.constant dense<0xFF800000> : vector<16xf32>
    %13 = vector.multi_reduction <maximumf>, %12, %cst_11 [0] : vector<16x16xf32> to vector<16xf32>
    %14 = vector.shape_cast %13 : vector<16xf32> to vector<1x16xf32>
    %15 = vector.broadcast %14 : vector<1x16xf32> to vector<16x16xf32>
    %16 = arith.subf %12, %15 : vector<16x16xf32>
    %17 = math.exp %16 : vector<16x16xf32>
    %cst_12 = arith.constant dense<0.000000e+00> : vector<16xf32>
    %18 = vector.multi_reduction <add>, %17, %cst_12 [0] : vector<16x16xf32> to vector<16xf32>
    %19 = vector.shape_cast %18 : vector<16xf32> to vector<1x16xf32>
    %20 = vector.broadcast %19 : vector<1x16xf32> to vector<16x16xf32>
    %21 = arith.divf %17, %20 : vector<16x16xf32>
    %c0_13 = arith.constant 0 : index
    %c0_14 = arith.constant 0 : index
    %22 = vector.load %arg6[%c0_13, %c0_14] : memref<16x16xf32, #tpu.memory_space<vmem>>, vector<16x16xf32>
    tpu.vector_store %arg6[%c0_13, %c0_14], %21 {strides = array<i32>} : memref<16x16xf32, #tpu.memory_space<vmem>>, vector<16x16xf32>,
    return
  }
  func.func @transform_0(%arg0: i32) -> (i32, i32) {
    %c0_i32 = arith.constant 0 : i32
    %c0_i32_0 = arith.constant 0 : i32
    return %c0_i32, %arg0 : i32, i32
  }
  func.func @transform_1(%arg0: i32) -> (i32, i32) {
    %c0_i32 = arith.constant 0 : i32
    %c0_i32_0 = arith.constant 0 : i32
    %c0_i32_1 = arith.constant 0 : i32
    return %c0_i32, %c0_i32_0 : i32, i32
  }
  func.func @transform_2(%arg0: i32) -> (i32, i32) {
    %c0_i32 = arith.constant 0 : i32
    %c0_i32_0 = arith.constant 0 : i32
    %c0_i32_1 = arith.constant 0 : i32
    return %c0_i32, %c0_i32_0 : i32, i32
  }
  func.func @transform_3(%arg0: i32) -> (i32, i32) {
    %c0_i32 = arith.constant 0 : i32
    %c0_i32_0 = arith.constant 0 : i32
    %c0_i32_1 = arith.constant 0 : i32
    return %c0_i32, %c0_i32_0 : i32, i32
  }
  func.func @transform_4(%arg0: i32) -> (i32, i32) {
    %c0_i32 = arith.constant 0 : i32
    %c0_i32_0 = arith.constant 0 : i32
    %c0_i32_1 = arith.constant 0 : i32
    return %c0_i32, %c0_i32_0 : i32, i32
  }
  func.func @transform_5(%arg0: i32) -> (i32, i32) {
    %c0_i32 = arith.constant 0 : i32
    %c0_i32_0 = arith.constant 0 : i32
    return %c0_i32, %arg0 : i32, i32
  }
}

</mosaic_0001>

<llo_original>
// kernel: model_phone_combined.1
$region0: #{model_phone_combined.1}
  #allocation0 [shape = 'u32[]', space=smem, size = 0x4, offset = 0x4, fixed_abs, tag = 'smem constant byte address 0x4 - core index']
  #allocation1 [shape = 'u32[144,128]{1,0:T(1,128)}', space=vmem, size = 0x12000, scoped, tag = 'internal scratch']
  %s0 = inlined_call_operand.vmem [shape: f32[16,16], index: 0, kind: input, shape index: {}]
  %s1 = inlined_call_operand.vmem [shape: f32[32,16], index: 1, kind: input, shape index: {}]
  %s2 = inlined_call_operand.vmem [shape: f32[32,1], index: 2, kind: input, shape index: {}]
  %s3 = inlined_call_operand.vmem [shape: f32[16,32], index: 3, kind: input, shape index: {}]
  %s4 = inlined_call_operand.vmem [shape: f32[16,1], index: 4, kind: input, shape index: {}]
  %s5 = inlined_call_operand.vmem [shape: f32[16,16], index: 5, kind: output, shape index: {}]
  %s6 = sld [smem:[#allocation0]]
  $region30: #{model_phone_combined.1} parent=0
    _
  %s8 = ssub.s32 1, %s6
  %s9 = scalar_select 0, %s8, %s6
  // Predicated region
  $region2: #{model_phone_combined.1} parent=0 // pred_check
    _
  $region3: #{model_phone_combined.1} parent=0 // pred_check_branch
    %11 = sbr.rel (0) target = $region5
  $region4: #{model_phone_combined.1} parent=0 // pred_region
    _
  $region5: #{model_phone_combined.1} parent=0 // pred_fallthru
    _
  // Predicated region
  $region6: #{model_phone_combined.1} parent=0 // pred_check
    _
  $region7: #{model_phone_combined.1} parent=0 // pred_check_branch
    %13 = sbr.rel (0) target = $region9
  $region8: #{model_phone_combined.1} parent=0 // pred_region
    _
  $region9: #{model_phone_combined.1} parent=0 // pred_fallthru
    _
  // Predicated region
  $region10: #{model_phone_combined.1} parent=0 // pred_check
    _
  $region11: #{model_phone_combined.1} parent=0 // pred_check_branch
    %15 = sbr.rel (0) target = $region13
  $region12: #{model_phone_combined.1} parent=0 // pred_region
    _
  $region13: #{model_phone_combined.1} parent=0 // pred_fallthru
    _
  // Predicated region
  $region14: #{model_phone_combined.1} parent=0 // pred_check
    _
  $region15: #{model_phone_combined.1} parent=0 // pred_check_branch
    %17 = sbr.rel (0) target = $region17
  $region16: #{model_phone_combined.1} parent=0 // pred_region
    _
  $region17: #{model_phone_combined.1} parent=0 // pred_fallthru
    _
  // Predicated region
  $region18: #{model_phone_combined.1} parent=0 // pred_check
    _
  $region19: #{model_phone_combined.1} parent=0 // pred_check_branch
    %19 = sbr.rel (0) target = $region21
  $region20: #{model_phone_combined.1} parent=0 // pred_region
    _
  $region21: #{model_phone_combined.1} parent=0 // pred_fallthru
    _
  %v20 = vld [vmem:[%s1] sm:$0xff]
  %v21 = vld [vmem:[%s1 + $0x8] sm:$0xff]
  %v22 = vld [vmem:[%s1 + $0x10] sm:$0xff]
  %v23 = vld [vmem:[%s1 + $0x18] sm:$0xff]
  %v24 = vld [vmem:[%s0] sm:$0xff]
  %v25 = vld [vmem:[%s0 + $0x8] sm:$0xff]
  %v26 = vld [vmem:[%s2] sm:$0xff]
  %v27 = vld [vmem:[%s2 + $0x8] sm:$0xff]
  %v28 = vld [vmem:[%s2 + $0x10] sm:$0xff]
  %v29 = vld [vmem:[%s2 + $0x18] sm:$0xff]
  %31 = vset.pattern.permute.xlu0 0
  %32 = vperm.xlu0 %31, %v26
  %v33 = vpop.permute.xlu0 %32
  %36 = vset.pattern.permute.xlu0 0
  %37 = vperm.xlu0 %36, %v27
  %v38 = vpop.permute.xlu0 %37
  %41 = vset.pattern.permute.xlu0 0
  %42 = vperm.xlu0 %41, %v28
  %v43 = vpop.permute.xlu0 %42
  %46 = vset.pattern.permute.xlu0 0
  %47 = vperm.xlu0 %46, %v29
  %v48 = vpop.permute.xlu0 %47
  %vm50 = vcmask 130048
  %v52 = vsel %vm50, %v20, 0
  %v55 = vsel %vm50, %v21, 0
  %v58 = vsel %vm50, %v22, 0
  %v61 = vsel %vm50, %v23, 0
  %63 = vmatprep.subr.mxu0 0.0
  %64 = vmatpush1.msra.mxu0 0.0
  %65 = vmatprep.subr.mxu0 0.0
  %66 = vmatpush1.msra.mxu0 0.0
  %67 = vmatprep.subr.mxu0 0.0
  %68 = vmatpush1.msra.mxu0 0.0
  %69 = vmatprep.subr.mxu0 0.0
  %70 = vmatpush1.msra.mxu0 0.0
  %71 = vmatprep.subr.mxu0 0.0
  %72 = vmatpush1.msra.mxu0 0.0
  %73 = vmatprep.subr.mxu0 0.0
  %74 = vmatpush1.msra.mxu0 0.0
  %75 = vmatprep.subr.mxu0 0.0
  %76 = vmatpush1.msra.mxu0 0.0
  %77 = vmatprep.subr.mxu0 0.0
  %78 = vmatpush1.msra.mxu0 0.0
  %79 = vmatprep.subr.mxu0 0.0
  %80 = vmatpush1.msra.mxu0 0.0
  %81 = vmatprep.subr.mxu0 0.0
  %82 = vmatpush1.msra.mxu0 0.0
  %83 = vmatprep.subr.mxu0 0.0
  %84 = vmatpush1.msra.mxu0 0.0
  %85 = vmatprep.subr.mxu0 0.0
  %86 = vmatpush1.msra.mxu0 0.0
  %87 = vmatprep.subr.mxu0 0.0
  %88 = vmatpush1.msra.mxu0 0.0
  %89 = vmatprep.subr.mxu0 0.0
  %90 = vmatpush1.msra.mxu0 0.0
  %91 = vmatprep.subr.mxu0 0.0
  %92 = vmatpush1.msra.mxu0 %v25
  %93 = vmatprep.subr.mxu0 0.0
  %94 = vmatpush1.msra.mxu0 %v24
  %95 = vmatprep.subr.mxu0 0.0
  %96 = vmatpush2.msra.mxu0 0.0
  %97 = vmatprep.subr.mxu0 0.0
  %98 = vmatpush2.msra.mxu0 0.0
  %99 = vmatprep.subr.mxu0 0.0
  %100 = vmatpush2.msra.mxu0 0.0
  %101 = vmatprep.subr.mxu0 0.0
  %102 = vmatpush2.msra.mxu0 0.0
  %103 = vmatprep.subr.mxu0 0.0
  %104 = vmatpush2.msra.mxu0 0.0
  %105 = vmatprep.subr.mxu0 0.0
  %106 = vmatpush2.msra.mxu0 0.0
  %107 = vmatprep.subr.mxu0 0.0
  %108 = vmatpush2.msra.mxu0 0.0
  %109 = vmatprep.subr.mxu0 0.0
  %110 = vmatpush2.msra.mxu0 0.0
  %111 = vmatprep.subr.mxu0 0.0
  %112 = vmatpush2.msra.mxu0 0.0
  %113 = vmatprep.subr.mxu0 0.0
  %114 = vmatpush2.msra.mxu0 0.0
  %115 = vmatprep.subr.mxu0 0.0
  %116 = vmatpush2.msra.mxu0 0.0
  %117 = vmatprep.subr.mxu0 0.0
  %118 = vmatpush2.msra.mxu0 0.0
  %119 = vmatprep.subr.mxu0 0.0
  %120 = vmatpush2.msra.mxu0 0.0
  %121 = vmatprep.subr.mxu0 0.0
  %122 = vmatpush2.msra.mxu0 0.0
  %123 = vmatprep.subr.mxu0 0.0
  %124 = vmatpush2.msra.mxu0 0.0
  %125 = vmatprep.subr.mxu0 0.0
  %126 = vmatpush2.msra.mxu0 0.0
  %127 = vmatprep.mubr.f32.mxu0 0.0
  %128 = vmatmul.mubr.f32.gmra.mxu0 %v52
  %v129 = vpop.f32.mrf.mxu0
  %v130 = vadd.f32 %v33, %v129
  %v131 = vpop.f32.mrf.mxu0
  %132 = vmatprep.mubr.f32.mxu0 0.0
  %133 = vmatmul.mubr.f32.gmra.mxu0 %v55
  %v134 = vpop.f32.mrf.mxu0
  %v135 = vadd.f32 %v38, %v134
  %v136 = vpop.f32.mrf.mxu0
  %137 = vmatprep.mubr.f32.mxu0 0.0
  %138 = vmatmul.mubr.f32.gmra.mxu0 %v58
  %v139 = vpop.f32.mrf.mxu0
  %v140 = vadd.f32 %v43, %v139
  %v141 = vpop.f32.mrf.mxu0
  %142 = vmatprep.mubr.f32.mxu0 0.0
  %143 = vmatmul.mubr.f32.gmra.mxu0 %v61
  %v144 = vpop.f32.mrf.mxu0
  %v145 = vadd.f32 %v48, %v144
  %v146 = vpop.f32.mrf.mxu0
  %147 = vdwg.mxu0
  %v148 = vmax.f32 %v130, 0.0
  %v149 = vmax.f32 %v135, 0.0
  %v150 = vmax.f32 %v140, 0.0
  %v151 = vmax.f32 %v145, 0.0
  %v152 = vld [vmem:[%s3] sm:$0xff]
  %v153 = vld [vmem:[%s3 + $0x8] sm:$0xff]
  %v154 = vld [vmem:[%s4] sm:$0xff]
  %v155 = vld [vmem:[%s4 + $0x8] sm:$0xff]
  %157 = vset.pattern.permute.xlu0 0
  %158 = vperm.xlu0 %157, %v154
  %v159 = vpop.permute.xlu0 %158
  %162 = vset.pattern.permute.xlu0 0
  %163 = vperm.xlu0 %162, %v155
  %v164 = vpop.permute.xlu0 %163
  %vm166 = vcmask 261120
  %v168 = vsel %vm166, %v152, 0
  %v171 = vsel %vm166, %v153, 0
  %173 = vmatprep.subr.mxu0 0.0
  %174 = vmatpush1.msra.mxu0 0.0
  %175 = vmatprep.subr.mxu0 0.0
  %176 = vmatpush1.msra.mxu0 0.0
  %177 = vmatprep.subr.mxu0 0.0
  %178 = vmatpush1.msra.mxu0 0.0
  %179 = vmatprep.subr.mxu0 0.0
  %180 = vmatpush1.msra.mxu0 0.0
  %181 = vmatprep.subr.mxu0 0.0
  %182 = vmatpush1.msra.mxu0 0.0
  %183 = vmatprep.subr.mxu0 0.0
  %184 = vmatpush1.msra.mxu0 0.0
  %185 = vmatprep.subr.mxu0 0.0
  %186 = vmatpush1.msra.mxu0 0.0
  %187 = vmatprep.subr.mxu0 0.0
  %188 = vmatpush1.msra.mxu0 0.0
  %189 = vmatprep.subr.mxu0 0.0
  %190 = vmatpush1.msra.mxu0 0.0
  %191 = vmatprep.subr.mxu0 0.0
  %192 = vmatpush1.msra.mxu0 0.0
  %193 = vmatprep.subr.mxu0 0.0
  %194 = vmatpush1.msra.mxu0 0.0
  %195 = vmatprep.subr.mxu0 0.0
  %196 = vmatpush1.msra.mxu0 0.0
  %197 = vmatprep.subr.mxu0 0.0
  %198 = vmatpush1.msra.mxu0 %v151
  %199 = vmatprep.subr.mxu0 0.0
  %200 = vmatpush1.msra.mxu0 %v150
  %201 = vmatprep.subr.mxu0 0.0
  %202 = vmatpush1.msra.mxu0 %v149
  %203 = vmatprep.subr.mxu0 0.0
  %204 = vmatpush1.msra.mxu0 %v148
  %205 = vmatprep.subr.mxu0 0.0
  %206 = vmatpush2.msra.mxu0 0.0
  %207 = vmatprep.subr.mxu0 0.0
  %208 = vmatpush2.msra.mxu0 0.0
  %209 = vmatprep.subr.mxu0 0.0
  %210 = vmatpush2.msra.mxu0 0.0
  %211 = vmatprep.subr.mxu0 0.0
  %212 = vmatpush2.msra.mxu0 0.0
  %213 = vmatprep.subr.mxu0 0.0
  %214 = vmatpush2.msra.mxu0 0.0
  %215 = vmatprep.subr.mxu0 0.0
  %216 = vmatpush2.msra.mxu0 0.0
  %217 = vmatprep.subr.mxu0 0.0
  %218 = vmatpush2.msra.mxu0 0.0
  %219 = vmatprep.subr.mxu0 0.0
  %220 = vmatpush2.msra.mxu0 0.0
  %221 = vmatprep.subr.mxu0 0.0
  %222 = vmatpush2.msra.mxu0 0.0
  %223 = vmatprep.subr.mxu0 0.0
  %224 = vmatpush2.msra.mxu0 0.0
  %225 = vmatprep.subr.mxu0 0.0
  %226 = vmatpush2.msra.mxu0 0.0
  %227 = vmatprep.subr.mxu0 0.0
  %228 = vmatpush2.msra.mxu0 0.0
  %229 = vmatprep.subr.mxu0 0.0
  %230 = vmatpush2.msra.mxu0 0.0
  %231 = vmatprep.subr.mxu0 0.0
  %232 = vmatpush2.msra.mxu0 0.0
  %233 = vmatprep.subr.mxu0 0.0
  %234 = vmatpush2.msra.mxu0 0.0
  %235 = vmatprep.subr.mxu0 0.0
  %236 = vmatpush2.msra.mxu0 0.0
  %237 = vmatprep.mubr.f32.mxu0 0.0
  %238 = vmatmul.mubr.f32.gmra.mxu0 %v168
  %v239 = vpop.f32.mrf.mxu0
  %v240 = vadd.f32 %v159, %v239
  %v241 = vpop.f32.mrf.mxu0
  %242 = vmatprep.mubr.f32.mxu0 0.0
  %243 = vmatmul.mubr.f32.gmra.mxu0 %v171
  %v244 = vpop.f32.mrf.mxu0
  %v245 = vadd.f32 %v164, %v244
  %v246 = vpop.f32.mrf.mxu0
  %247 = vdwg.mxu0
  %v248 = vsel %vm50, %v240, -inf
  %v249 = vsel %vm50, %v245, -inf
  %v250 = vmax.f32 %v248, %v249
  %v251 = vrot.slane %v250, 4
  %v252 = vmax.f32 %v250, %v251
  %v253 = vrot.slane %v252, 2
  %v254 = vmax.f32 %v252, %v253
  %v255 = vrot.slane %v254, 1
  %v256 = vmax.f32 %v254, %v255
  %v257 = vsub.f32 %v240, %v256
  %v258 = vsub.f32 %v245, %v256
  %v259 = vmul.f32 %v257, 1.442695
  %v260 = vpow.pop %v259
  %v261 = vmul.f32 %v258, 1.442695
  %v262 = vpow.pop %v261
  %v263 = vsel %vm50, %v260, 0.0
  %v264 = vsel %vm50, %v262, 0.0
  %v265 = vadd.f32 %v263, %v264
  %v266 = vrot.slane %v265, 4
  %v267 = vadd.f32 %v265, %v266
  %v268 = vrot.slane %v267, 2
  %v269 = vadd.f32 %v267, %v268
  %v270 = vrot.slane %v269, 1
  %v271 = vadd.f32 %v269, %v270
  %v272 = vrcp.pop %v271
  %v273 = vmul.f32 %v260, %v272
  %v274 = vmul.f32 %v262, %v272
  %275 = vst.msk [vmem:[%s5] sm:$0xff] %vm50, %v273
  %276 = vst.msk [vmem:[%s5 + $0x8] sm:$0xff] %vm50, %v274
  // Predicated region
  $region22: #{model_phone_combined.1} parent=0 // pred_check
    _
  $region23: #{model_phone_combined.1} parent=0 // pred_check_branch
    %278 = sbr.rel (0) target = $region25
  $region24: #{model_phone_combined.1} parent=0 // pred_region
    _
  $region25: #{model_phone_combined.1} parent=0 // pred_fallthru
    _
  // Predicated region
  $region26: #{model_phone_combined.1} parent=0 // pred_check
    _
  $region27: #{model_phone_combined.1} parent=0 // pred_check_branch
    %280 = sbr.rel (0) target = $region29
  $region28: #{model_phone_combined.1} parent=0 // pred_region
    _
  $region29: #{model_phone_combined.1} parent=0 // pred_fallthru
    _

</llo_original>
